<compile_context>
chip_gen: v7x
topology: tpu7x:2x2x1
jax: 0.10.0
libtpu: 0.0.40
codegen_flags: <defaults>
</compile_context>

<pallas_src>
import jax
import jax.numpy as jnp
from jax.experimental import pallas as pl
from jax.experimental.pallas import tpu as pltpu

# ----------------------------- model dims ----------------------------------
B = 2        # batch (number of bags)
N = 8        # patches per bag
D_IN = 32    # input feature dim
H = 32       # pre-attention hidden dim (= attention input_dim)
HA = 16      # ABMIL attention hidden dim
NC = 1       # n_classes in BatchedABMIL (kernel assumes NC == 1)


# ------------------------- in-kernel math helpers ---------------------------
def _erf(x):
    # Abramowitz & Stegun 7.1.26 rational approximation, |err| <= 1.5e-7.
    # NOTE: ~10 serial VALU mul/adds per element; jax.lax.erf could move this
    # to the EUP where Mosaic supports it, but the polynomial is kept for
    # guaranteed lowering (exp() below already rides the EUP slot).
    sgn = jnp.where(x >= 0.0, 1.0, -1.0)
    ax = jnp.abs(x)
    t = 1.0 / (1.0 + 0.3275911 * ax)
    poly = t * (0.254829592
                + t * (-0.284496736
                       + t * (1.421413741
                              + t * (-1.453152027
                                     + t * 1.061405429))))
    return sgn * (1.0 - poly * jnp.exp(-ax * ax))


def _gelu_exact(x):
    # torch.nn.GELU() default (erf-based, NOT the tanh approximation)
    return 0.5 * x * (1.0 + _erf(x * 0.7071067811865476))


def _layernorm(x, gamma, beta, eps=1e-5):
    mu = jnp.mean(x, axis=-1, keepdims=True)
    var = jnp.mean((x - mu) ** 2, axis=-1, keepdims=True)
    return (x - mu) * jax.lax.rsqrt(var + eps) * gamma + beta


# --------------------------------- kernel -----------------------------------
def abmil_kernel(x_ref, w_ref, v_ref, out_ref):
    x = x_ref[...]            # [B*N, D_IN]  (batch folded into rows)
    W = w_ref[...]            # [max(D_IN,H), 2*H + 2*HA] = (w1 | w2 | wa | wb)
    V = v_ref[...]            # [10, H] packed biases / LN params / wc row / bc

    bn, d_in = x.shape
    bsz, h = out_ref.shape
    n = bn // bsz
    ha = (W.shape[1] - 2 * h) // 2

    w1 = W[0:d_in, 0:h]
    w2 = W[0:h, h:2 * h]
    wg = W[0:h, 2 * h:2 * h + 2 * ha]          # fused gate weights [wa | wb]

    b1, g1, be1 = V[0:1, 0:h], V[1:2, 0:h], V[2:3, 0:h]
    b2, g2, be2 = V[3:4, 0:h], V[4:5, 0:h], V[5:6, 0:h]
    ba, bb = V[6:7, 0:ha], V[7:8, 0:ha]
    wc_row = V[8:9, 0:ha]                      # attention_c weight (NC == 1)
    bc = V[9:10, 0:1]

    # ---- pre-attention MLP:  Linear -> LN -> GELU -> (Dropout)  x2 ---------
    t = jnp.dot(x, w1, preferred_element_type=jnp.float32) + b1
    t = _gelu_exact(_layernorm(t, g1, be1))
    t = jnp.dot(t, w2, preferred_element_type=jnp.float32) + b2
    emb = _gelu_exact(_layernorm(t, g2, be2))                   # [B*N, H]

    # ---- BatchedABMIL gated attention (single fused gate matmul) -----------
    z = jnp.dot(emb, wg, preferred_element_type=jnp.float32)    # [B*N, 2*HA]
    a = jnp.tanh(z[:, 0:ha] + ba)
    g = jax.nn.sigmoid(z[:, ha:2 * ha] + bb)
    gated = a * g                                               # [B*N, HA]

    # n_classes == 1 projection as a VPU multiply + lane reduce (no MXU trip)
    logits = jnp.sum(gated * wc_row, axis=-1, keepdims=True) + bc   # [B*N, 1]

    # ---- per-bag softmax over patches + attention-weighted pooling ---------
    # B is tiny; static loop keeps all ops 2-D (sublane reduces, static slices)
    for b in range(bsz):
        lo = b * n
        lg = logits[lo:lo + n, :]                               # [N, 1]
        m = jnp.max(lg, axis=0, keepdims=True)
        e = jnp.exp(lg - m)
        attn = e / jnp.sum(e, axis=0, keepdims=True)            # [N, 1]
        pooled = jnp.sum(emb[lo:lo + n, :] * attn, axis=0, keepdims=True)
        out_ref[b:b + 1, :] = pooled.astype(out_ref.dtype)      # [1, H]


# -------------------------------- wrapper ------------------------------------
def _pack_params(params):
    """Pack 14 parameter tensors into 2 slabs (1 weight slab, 1 vector slab)."""
    d_in, h = params["w1"].shape
    rows = max(d_in, h)

    def pad_rows(w):
        return jnp.pad(w, ((0, rows - w.shape[0]), (0, 0)))

    w_slab = jnp.concatenate(
        [pad_rows(params["w1"]), pad_rows(params["w2"]),
         pad_rows(params["wa"]), pad_rows(params["wb"])], axis=1)

    def row(v):
        v = jnp.asarray(v).reshape(1, -1)
        return jnp.pad(v, ((0, 0), (0, h - v.shape[1])))

    v_slab = jnp.concatenate(
        [row(params["b1"]), row(params["g1"]), row(params["be1"]),
         row(params["b2"]), row(params["g2"]), row(params["be2"]),
         row(params["ba"]), row(params["bb"]),
         row(params["wc"].T),          # [NC, HA] -> row (assumes NC == 1)
         row(params["bc"])], axis=0)   # -> [10, H]

    return w_slab.astype(jnp.float32), v_slab.astype(jnp.float32)


@jax.jit
def abmil_embedder(bags, params):
    bsz, n, d_in = bags.shape
    h = params["w1"].shape[1]

    w_slab, v_slab = _pack_params(params)
    x2 = bags.reshape(bsz * n, d_in).astype(jnp.float32)   # fold batch -> rows

    # Single kernel invocation: no grid, all operands resident in VMEM.
    return pl.pallas_call(
        abmil_kernel,
        out_shape=jax.ShapeDtypeStruct((bsz, h), jnp.float32),
        in_specs=[pl.BlockSpec(memory_space=pltpu.MemorySpace.VMEM)] * 3,
        out_specs=pl.BlockSpec(memory_space=pltpu.MemorySpace.VMEM),
    )(x2, w_slab, v_slab)


# ------------------------- pure-JAX reference --------------------------------
def reference(bags, p):
    def ln(x, g, b):
        mu = x.mean(-1, keepdims=True)
        var = ((x - mu) ** 2).mean(-1, keepdims=True)
        return (x - mu) / jnp.sqrt(var + 1e-5) * g + b

    h = bags @ p["w1"] + p["b1"]
    h = jax.nn.gelu(ln(h, p["g1"], p["be1"]), approximate=False)
    h = h @ p["w2"] + p["b2"]
    emb = jax.nn.gelu(ln(h, p["g2"], p["be2"]), approximate=False)
    a = jnp.tanh(emb @ p["wa"] + p["ba"])
    b = jax.nn.sigmoid(emb @ p["wb"] + p["bb"])
    logits = (a * b) @ p["wc"] + p["bc"]                   # [B, N, 1]
    attn = jax.nn.softmax(logits, axis=1)
    return jnp.sum(emb * attn, axis=1)                     # [B, H]


# ----------------------------- param init ------------------------------------
def init_params(key):
    ks = jax.random.split(key, 8)
    f32 = jnp.float32
    return {
        "w1": 0.05 * jax.random.normal(ks[0], (D_IN, H), f32),
        "b1": 0.01 * jax.random.normal(ks[1], (1, H), f32),
        "g1": jnp.ones((1, H), f32),
        "be1": jnp.zeros((1, H), f32),
        "w2": 0.05 * jax.random.normal(ks[2], (H, H), f32),
        "b2": 0.01 * jax.random.normal(ks[3], (1, H), f32),
        "g2": jnp.ones((1, H), f32),
        "be2": jnp.zeros((1, H), f32),
        "wa": 0.05 * jax.random.normal(ks[4], (H, HA), f32),
        "ba": jnp.zeros((1, HA), f32),
        "wb": 0.05 * jax.random.normal(ks[5], (H, HA), f32),
        "bb": jnp.zeros((1, HA), f32),
        "wc": 0.05 * jax.random.normal(ks[6], (HA, NC), f32),
        "bc": jnp.zeros((1, NC), f32),
    }


if __name__ == "__main__":
    key = jax.random.PRNGKey(0)
    k_x, k_p = jax.random.split(key)
    bags = jax.random.normal(k_x, (B, N, D_IN), jnp.float32)
    params = init_params(k_p)

    out = abmil_embedder(bags, params)
    out = jax.block_until_ready(out)

    ref = reference(bags, params)
    assert out.shape == (B, H), out.shape
    assert jnp.allclose(out, ref, rtol=2e-3, atol=2e-3), (
        f"max abs err {jnp.max(jnp.abs(out - ref))}")

    print("KERNEL_OK")
</pallas_src>

<mosaic_0001>
module attributes {stable_mosaic.version = 11 : i64} {
  func.func @abmil_kernel(%arg0: memref<16x32xf32, #tpu.memory_space<vmem>>, %arg1: memref<32x96xf32, #tpu.memory_space<vmem>>, %arg2: memref<10x32xf32, #tpu.memory_space<vmem>>, %arg3: memref<2x32xf32, #tpu.memory_space<vmem>>) attributes {dimension_semantics = [], scalar_prefetch = 0 : i64, scratch_operands = 0 : i64, tpu.core_type = #tpu.core_type<tc>} {
    %c0 = arith.constant 0 : index
    %c0_0 = arith.constant 0 : index
    %0 = vector.load %arg0[%c0, %c0_0] : memref<16x32xf32, #tpu.memory_space<vmem>>, vector<16x32xf32>
    %c0_1 = arith.constant 0 : index
    %c0_2 = arith.constant 0 : index
    %1 = vector.load %arg1[%c0_1, %c0_2] : memref<32x96xf32, #tpu.memory_space<vmem>>, vector<32x96xf32>
    %c0_3 = arith.constant 0 : index
    %c0_4 = arith.constant 0 : index
    %2 = vector.load %arg2[%c0_3, %c0_4] : memref<10x32xf32, #tpu.memory_space<vmem>>, vector<10x32xf32>
    %3 = vector.extract_strided_slice %1 {offsets = [0, 0], sizes = [32, 32], strides = [1, 1]} : vector<32x96xf32> to vector<32x32xf32>
    %4 = vector.extract_strided_slice %1 {offsets = [0, 32], sizes = [32, 32], strides = [1, 1]} : vector<32x96xf32> to vector<32x32xf32>
    %5 = vector.extract_strided_slice %1 {offsets = [0, 64], sizes = [32, 32], strides = [1, 1]} : vector<32x96xf32> to vector<32x32xf32>
    %6 = vector.extract_strided_slice %2 {offsets = [0, 0], sizes = [1, 32], strides = [1, 1]} : vector<10x32xf32> to vector<1x32xf32>
    %7 = vector.extract_strided_slice %2 {offsets = [1, 0], sizes = [1, 32], strides = [1, 1]} : vector<10x32xf32> to vector<1x32xf32>
    %8 = vector.extract_strided_slice %2 {offsets = [2, 0], sizes = [1, 32], strides = [1, 1]} : vector<10x32xf32> to vector<1x32xf32>
    %9 = vector.extract_strided_slice %2 {offsets = [3, 0], sizes = [1, 32], strides = [1, 1]} : vector<10x32xf32> to vector<1x32xf32>
    %10 = vector.extract_strided_slice %2 {offsets = [4, 0], sizes = [1, 32], strides = [1, 1]} : vector<10x32xf32> to vector<1x32xf32>
    %11 = vector.extract_strided_slice %2 {offsets = [5, 0], sizes = [1, 32], strides = [1, 1]} : vector<10x32xf32> to vector<1x32xf32>
    %12 = vector.extract_strided_slice %2 {offsets = [6, 0], sizes = [1, 16], strides = [1, 1]} : vector<10x32xf32> to vector<1x16xf32>
    %13 = vector.extract_strided_slice %2 {offsets = [7, 0], sizes = [1, 16], strides = [1, 1]} : vector<10x32xf32> to vector<1x16xf32>
    %14 = vector.extract_strided_slice %2 {offsets = [8, 0], sizes = [1, 16], strides = [1, 1]} : vector<10x32xf32> to vector<1x16xf32>
    %15 = vector.extract_strided_slice %2 {offsets = [9, 0], sizes = [1, 1], strides = [1, 1]} : vector<10x32xf32> to vector<1x1xf32>
    %cst = arith.constant dense<0.000000e+00> : vector<16x32xf32>
    %16 = tpu.matmul %0, %3, %cst {dimension_numbers = #tpu.dot_dimension_numbers<[1], [0], [0], [1], [0, 0, 1, 1], [], []>} : vector<16x32xf32>, vector<32x32xf32>, vector<16x32xf32> -> vector<16x32xf32>
    %17 = vector.broadcast %6 : vector<1x32xf32> to vector<16x32xf32>
    %18 = arith.addf %16, %17 : vector<16x32xf32>
    %cst_5 = arith.constant dense<0.000000e+00> : vector<16xf32>
    %19 = vector.multi_reduction <add>, %18, %cst_5 [1] : vector<16x32xf32> to vector<16xf32>
    %20 = vector.shape_cast %19 : vector<16xf32> to vector<16x1xf32>
    %cst_6 = arith.constant 3.200000e+01 : f32
    %21 = vector.broadcast %cst_6 : f32 to vector<16x1xf32>
    %22 = arith.divf %20, %21 : vector<16x1xf32>
    %23 = vector.broadcast %22 : vector<16x1xf32> to vector<16x32xf32>
    %24 = arith.subf %18, %23 : vector<16x32xf32>
    %25 = arith.mulf %24, %24 : vector<16x32xf32>
    %cst_7 = arith.constant dense<0.000000e+00> : vector<16xf32>
    %26 = vector.multi_reduction <add>, %25, %cst_7 [1] : vector<16x32xf32> to vector<16xf32>
    %27 = vector.shape_cast %26 : vector<16xf32> to vector<16x1xf32>
    %cst_8 = arith.constant 3.200000e+01 : f32
    %28 = vector.broadcast %cst_8 : f32 to vector<16x1xf32>
    %29 = arith.divf %27, %28 : vector<16x1xf32>
    %30 = vector.broadcast %22 : vector<16x1xf32> to vector<16x32xf32>
    %31 = arith.subf %18, %30 : vector<16x32xf32>
    %cst_9 = arith.constant 9.99999974E-6 : f32
    %32 = vector.broadcast %cst_9 : f32 to vector<16x1xf32>
    %33 = arith.addf %29, %32 : vector<16x1xf32>
    %34 = math.rsqrt %33 : vector<16x1xf32>
    %35 = vector.broadcast %34 : vector<16x1xf32> to vector<16x32xf32>
    %36 = arith.mulf %31, %35 : vector<16x32xf32>
    %37 = vector.broadcast %7 : vector<1x32xf32> to vector<16x32xf32>
    %38 = arith.mulf %36, %37 : vector<16x32xf32>
    %39 = vector.broadcast %8 : vector<1x32xf32> to vector<16x32xf32>
    %40 = arith.addf %38, %39 : vector<16x32xf32>
    %cst_10 = arith.constant 5.000000e-01 : f32
    %41 = vector.broadcast %cst_10 : f32 to vector<16x32xf32>
    %42 = arith.mulf %41, %40 : vector<16x32xf32>
    %cst_11 = arith.constant 0.707106769 : f32
    %43 = vector.broadcast %cst_11 : f32 to vector<16x32xf32>
    %44 = arith.mulf %40, %43 : vector<16x32xf32>
    %cst_12 = arith.constant 0.000000e+00 : f32
    %45 = vector.broadcast %cst_12 : f32 to vector<16x32xf32>
    %46 = arith.cmpf oge, %44, %45 : vector<16x32xf32>
    %cst_13 = arith.constant 1.000000e+00 : f32
    %cst_14 = arith.constant -1.000000e+00 : f32
    %47 = vector.broadcast %cst_13 : f32 to vector<16x32xf32>
    %48 = vector.broadcast %cst_14 : f32 to vector<16x32xf32>
    %49 = arith.select %46, %47, %48 : vector<16x32xi1>, vector<16x32xf32>
    %50 = math.absf %44 : vector<16x32xf32>
    %cst_15 = arith.constant 0.327591091 : f32
    %51 = vector.broadcast %cst_15 : f32 to vector<16x32xf32>
    %52 = arith.mulf %51, %50 : vector<16x32xf32>
    %cst_16 = arith.constant 1.000000e+00 : f32
    %53 = vector.broadcast %cst_16 : f32 to vector<16x32xf32>
    %54 = arith.addf %53, %52 : vector<16x32xf32>
    %cst_17 = arith.constant 1.000000e+00 : f32
    %55 = vector.broadcast %cst_17 : f32 to vector<16x32xf32>
    %56 = arith.divf %55, %54 : vector<16x32xf32>
    %cst_18 = arith.constant 1.06140542 : f32
    %57 = vector.broadcast %cst_18 : f32 to vector<16x32xf32>
    %58 = arith.mulf %56, %57 : vector<16x32xf32>
    %cst_19 = arith.constant -1.45315206 : f32
    %59 = vector.broadcast %cst_19 : f32 to vector<16x32xf32>
    %60 = arith.addf %59, %58 : vector<16x32xf32>
    %61 = arith.mulf %56, %60 : vector<16x32xf32>
    %cst_20 = arith.constant 1.42141378 : f32
    %62 = vector.broadcast %cst_20 : f32 to vector<16x32xf32>
    %63 = arith.addf %62, %61 : vector<16x32xf32>
    %64 = arith.mulf %56, %63 : vector<16x32xf32>
    %cst_21 = arith.constant -0.284496725 : f32
    %65 = vector.broadcast %cst_21 : f32 to vector<16x32xf32>
    %66 = arith.addf %65, %64 : vector<16x32xf32>
    %67 = arith.mulf %56, %66 : vector<16x32xf32>
    %cst_22 = arith.constant 0.254829586 : f32
    %68 = vector.broadcast %cst_22 : f32 to vector<16x32xf32>
    %69 = arith.addf %68, %67 : vector<16x32xf32>
    %70 = arith.mulf %56, %69 : vector<16x32xf32>
    %cst_23 = arith.constant 0.000000e+00 : f32
    %71 = vector.broadcast %cst_23 : f32 to vector<16x32xf32>
    %72 = arith.subf %71, %50 : vector<16x32xf32>
    %73 = arith.mulf %72, %50 : vector<16x32xf32>
    %74 = math.exp %73 : vector<16x32xf32>
    %75 = arith.mulf %70, %74 : vector<16x32xf32>
    %cst_24 = arith.constant 1.000000e+00 : f32
    %76 = vector.broadcast %cst_24 : f32 to vector<16x32xf32>
    %77 = arith.subf %76, %75 : vector<16x32xf32>
    %78 = arith.mulf %49, %77 : vector<16x32xf32>
    %cst_25 = arith.constant 1.000000e+00 : f32
    %79 = vector.broadcast %cst_25 : f32 to vector<16x32xf32>
    %80 = arith.addf %79, %78 : vector<16x32xf32>
    %81 = arith.mulf %42, %80 : vector<16x32xf32>
    %cst_26 = arith.constant dense<0.000000e+00> : vector<16x32xf32>
    %82 = tpu.matmul %81, %4, %cst_26 {dimension_numbers = #tpu.dot_dimension_numbers<[1], [0], [0], [1], [0, 0, 1, 1], [], []>} : vector<16x32xf32>, vector<32x32xf32>, vector<16x32xf32> -> vector<16x32xf32>
    %83 = vector.broadcast %9 : vector<1x32xf32> to vector<16x32xf32>
    %84 = arith.addf %82, %83 : vector<16x32xf32>
    %cst_27 = arith.constant dense<0.000000e+00> : vector<16xf32>
    %85 = vector.multi_reduction <add>, %84, %cst_27 [1] : vector<16x32xf32> to vector<16xf32>
    %86 = vector.shape_cast %85 : vector<16xf32> to vector<16x1xf32>
    %cst_28 = arith.constant 3.200000e+01 : f32
    %87 = vector.broadcast %cst_28 : f32 to vector<16x1xf32>
    %88 = arith.divf %86, %87 : vector<16x1xf32>
    %89 = vector.broadcast %88 : vector<16x1xf32> to vector<16x32xf32>
    %90 = arith.subf %84, %89 : vector<16x32xf32>
    %91 = arith.mulf %90, %90 : vector<16x32xf32>
    %cst_29 = arith.constant dense<0.000000e+00> : vector<16xf32>
    %92 = vector.multi_reduction <add>, %91, %cst_29 [1] : vector<16x32xf32> to vector<16xf32>
    %93 = vector.shape_cast %92 : vector<16xf32> to vector<16x1xf32>
    %cst_30 = arith.constant 3.200000e+01 : f32
    %94 = vector.broadcast %cst_30 : f32 to vector<16x1xf32>
    %95 = arith.divf %93, %94 : vector<16x1xf32>
    %96 = vector.broadcast %88 : vector<16x1xf32> to vector<16x32xf32>
    %97 = arith.subf %84, %96 : vector<16x32xf32>
    %cst_31 = arith.constant 9.99999974E-6 : f32
    %98 = vector.broadcast %cst_31 : f32 to vector<16x1xf32>
    %99 = arith.addf %95, %98 : vector<16x1xf32>
    %100 = math.rsqrt %99 : vector<16x1xf32>
    %101 = vector.broadcast %100 : vector<16x1xf32> to vector<16x32xf32>
    %102 = arith.mulf %97, %101 : vector<16x32xf32>
    %103 = vector.broadcast %10 : vector<1x32xf32> to vector<16x32xf32>
    %104 = arith.mulf %102, %103 : vector<16x32xf32>
    %105 = vector.broadcast %11 : vector<1x32xf32> to vector<16x32xf32>
    %106 = arith.addf %104, %105 : vector<16x32xf32>
    %cst_32 = arith.constant 5.000000e-01 : f32
    %107 = vector.broadcast %cst_32 : f32 to vector<16x32xf32>
    %108 = arith.mulf %107, %106 : vector<16x32xf32>
    %cst_33 = arith.constant 0.707106769 : f32
    %109 = vector.broadcast %cst_33 : f32 to vector<16x32xf32>
    %110 = arith.mulf %106, %109 : vector<16x32xf32>
    %cst_34 = arith.constant 0.000000e+00 : f32
    %111 = vector.broadcast %cst_34 : f32 to vector<16x32xf32>
    %112 = arith.cmpf oge, %110, %111 : vector<16x32xf32>
    %cst_35 = arith.constant 1.000000e+00 : f32
    %cst_36 = arith.constant -1.000000e+00 : f32
    %113 = vector.broadcast %cst_35 : f32 to vector<16x32xf32>
    %114 = vector.broadcast %cst_36 : f32 to vector<16x32xf32>
    %115 = arith.select %112, %113, %114 : vector<16x32xi1>, vector<16x32xf32>
    %116 = math.absf %110 : vector<16x32xf32>
    %cst_37 = arith.constant 0.327591091 : f32
    %117 = vector.broadcast %cst_37 : f32 to vector<16x32xf32>
    %118 = arith.mulf %117, %116 : vector<16x32xf32>
    %cst_38 = arith.constant 1.000000e+00 : f32
    %119 = vector.broadcast %cst_38 : f32 to vector<16x32xf32>
    %120 = arith.addf %119, %118 : vector<16x32xf32>
    %cst_39 = arith.constant 1.000000e+00 : f32
    %121 = vector.broadcast %cst_39 : f32 to vector<16x32xf32>
    %122 = arith.divf %121, %120 : vector<16x32xf32>
    %cst_40 = arith.constant 1.06140542 : f32
    %123 = vector.broadcast %cst_40 : f32 to vector<16x32xf32>
    %124 = arith.mulf %122, %123 : vector<16x32xf32>
    %cst_41 = arith.constant -1.45315206 : f32
    %125 = vector.broadcast %cst_41 : f32 to vector<16x32xf32>
    %126 = arith.addf %125, %124 : vector<16x32xf32>
    %127 = arith.mulf %122, %126 : vector<16x32xf32>
    %cst_42 = arith.constant 1.42141378 : f32
    %128 = vector.broadcast %cst_42 : f32 to vector<16x32xf32>
    %129 = arith.addf %128, %127 : vector<16x32xf32>
    %130 = arith.mulf %122, %129 : vector<16x32xf32>
    %cst_43 = arith.constant -0.284496725 : f32
    %131 = vector.broadcast %cst_43 : f32 to vector<16x32xf32>
    %132 = arith.addf %131, %130 : vector<16x32xf32>
    %133 = arith.mulf %122, %132 : vector<16x32xf32>
    %cst_44 = arith.constant 0.254829586 : f32
    %134 = vector.broadcast %cst_44 : f32 to vector<16x32xf32>
    %135 = arith.addf %134, %133 : vector<16x32xf32>
    %136 = arith.mulf %122, %135 : vector<16x32xf32>
    %cst_45 = arith.constant 0.000000e+00 : f32
    %137 = vector.broadcast %cst_45 : f32 to vector<16x32xf32>
    %138 = arith.subf %137, %116 : vector<16x32xf32>
    %139 = arith.mulf %138, %116 : vector<16x32xf32>
    %140 = math.exp %139 : vector<16x32xf32>
    %141 = arith.mulf %136, %140 : vector<16x32xf32>
    %cst_46 = arith.constant 1.000000e+00 : f32
    %142 = vector.broadcast %cst_46 : f32 to vector<16x32xf32>
    %143 = arith.subf %142, %141 : vector<16x32xf32>
    %144 = arith.mulf %115, %143 : vector<16x32xf32>
    %cst_47 = arith.constant 1.000000e+00 : f32
    %145 = vector.broadcast %cst_47 : f32 to vector<16x32xf32>
    %146 = arith.addf %145, %144 : vector<16x32xf32>
    %147 = arith.mulf %108, %146 : vector<16x32xf32>
    %cst_48 = arith.constant dense<0.000000e+00> : vector<16x32xf32>
    %148 = tpu.matmul %147, %5, %cst_48 {dimension_numbers = #tpu.dot_dimension_numbers<[1], [0], [0], [1], [0, 0, 1, 1], [], []>} : vector<16x32xf32>, vector<32x32xf32>, vector<16x32xf32> -> vector<16x32xf32>
    %149 = vector.extract_strided_slice %148 {offsets = [0, 0], sizes = [16, 16], strides = [1, 1]} : vector<16x32xf32> to vector<16x16xf32>
    %150 = vector.broadcast %12 : vector<1x16xf32> to vector<16x16xf32>
    %151 = arith.addf %149, %150 : vector<16x16xf32>
    %152 = math.tanh %151 : vector<16x16xf32>
    %153 = vector.extract_strided_slice %148 {offsets = [0, 16], sizes = [16, 16], strides = [1, 1]} : vector<16x32xf32> to vector<16x16xf32>
    %154 = vector.broadcast %13 : vector<1x16xf32> to vector<16x16xf32>
    %155 = arith.addf %153, %154 : vector<16x16xf32>
    %156 = arith.negf %155 : vector<16x16xf32>
    %157 = math.exp %156 : vector<16x16xf32>
    %cst_49 = arith.constant 1.000000e+00 : f32
    %158 = vector.broadcast %cst_49 : f32 to vector<16x16xf32>
    %159 = arith.addf %158, %157 : vector<16x16xf32>
    %160 = arith.divf %158, %159 : vector<16x16xf32>
    %161 = arith.mulf %152, %160 : vector<16x16xf32>
    %162 = vector.broadcast %14 : vector<1x16xf32> to vector<16x16xf32>
    %163 = arith.mulf %161, %162 : vector<16x16xf32>
    %cst_50 = arith.constant dense<0.000000e+00> : vector<16xf32>
    %164 = vector.multi_reduction <add>, %163, %cst_50 [1] : vector<16x16xf32> to vector<16xf32>
    %165 = vector.shape_cast %164 : vector<16xf32> to vector<16x1xf32>
    %166 = vector.broadcast %15 : vector<1x1xf32> to vector<16x1xf32>
    %167 = arith.addf %165, %166 : vector<16x1xf32>
    %168 = vector.extract_strided_slice %167 {offsets = [0, 0], sizes = [8, 1], strides = [1, 1]} : vector<16x1xf32> to vector<8x1xf32>
    %cst_51 = arith.constant dense<0xFF800000> : vector<1xf32>
    %169 = vector.multi_reduction <maximumf>, %168, %cst_51 [0] : vector<8x1xf32> to vector<1xf32>
    %170 = vector.shape_cast %169 : vector<1xf32> to vector<1x1xf32>
    %171 = vector.broadcast %170 : vector<1x1xf32> to vector<8x1xf32>
    %172 = arith.subf %168, %171 : vector<8x1xf32>
    %173 = math.exp %172 : vector<8x1xf32>
    %cst_52 = arith.constant dense<0.000000e+00> : vector<1xf32>
    %174 = vector.multi_reduction <add>, %173, %cst_52 [0] : vector<8x1xf32> to vector<1xf32>
    %175 = vector.shape_cast %174 : vector<1xf32> to vector<1x1xf32>
    %176 = vector.broadcast %175 : vector<1x1xf32> to vector<8x1xf32>
    %177 = arith.divf %173, %176 : vector<8x1xf32>
    %178 = vector.extract_strided_slice %147 {offsets = [0, 0], sizes = [8, 32], strides = [1, 1]} : vector<16x32xf32> to vector<8x32xf32>
    %179 = vector.broadcast %177 : vector<8x1xf32> to vector<8x32xf32>
    %180 = arith.mulf %178, %179 : vector<8x32xf32>
    %cst_53 = arith.constant dense<0.000000e+00> : vector<32xf32>
    %181 = vector.multi_reduction <add>, %180, %cst_53 [0] : vector<8x32xf32> to vector<32xf32>
    %182 = vector.shape_cast %181 : vector<32xf32> to vector<1x32xf32>
    %c0_54 = arith.constant 0 : index
    %c0_55 = arith.constant 0 : index
    %183 = vector.load %arg3[%c0_54, %c0_55] : memref<2x32xf32, #tpu.memory_space<vmem>>, vector<1x32xf32>
    tpu.vector_store %arg3[%c0_54, %c0_55], %182 {strides = array<i32>} : memref<2x32xf32, #tpu.memory_space<vmem>>, vector<1x32xf32>,
    %184 = vector.extract_strided_slice %167 {offsets = [8, 0], sizes = [8, 1], strides = [1, 1]} : vector<16x1xf32> to vector<8x1xf32>
    %cst_56 = arith.constant dense<0xFF800000> : vector<1xf32>
    %185 = vector.multi_reduction <maximumf>, %184, %cst_56 [0] : vector<8x1xf32> to vector<1xf32>
    %186 = vector.shape_cast %185 : vector<1xf32> to vector<1x1xf32>
    %187 = vector.broadcast %186 : vector<1x1xf32> to vector<8x1xf32>
    %188 = arith.subf %184, %187 : vector<8x1xf32>
    %189 = math.exp %188 : vector<8x1xf32>
    %cst_57 = arith.constant dense<0.000000e+00> : vector<1xf32>
    %190 = vector.multi_reduction <add>, %189, %cst_57 [0] : vector<8x1xf32> to vector<1xf32>
    %191 = vector.shape_cast %190 : vector<1xf32> to vector<1x1xf32>
    %192 = vector.broadcast %191 : vector<1x1xf32> to vector<8x1xf32>
    %193 = arith.divf %189, %192 : vector<8x1xf32>
    %194 = vector.extract_strided_slice %147 {offsets = [8, 0], sizes = [8, 32], strides = [1, 1]} : vector<16x32xf32> to vector<8x32xf32>
    %195 = vector.broadcast %193 : vector<8x1xf32> to vector<8x32xf32>
    %196 = arith.mulf %194, %195 : vector<8x32xf32>
    %cst_58 = arith.constant dense<0.000000e+00> : vector<32xf32>
    %197 = vector.multi_reduction <add>, %196, %cst_58 [0] : vector<8x32xf32> to vector<32xf32>
    %198 = vector.shape_cast %197 : vector<32xf32> to vector<1x32xf32>
    %c1 = arith.constant 1 : index
    %c0_59 = arith.constant 0 : index
    %199 = vector.load %arg3[%c1, %c0_59] : memref<2x32xf32, #tpu.memory_space<vmem>>, vector<1x32xf32>
    tpu.vector_store %arg3[%c1, %c0_59], %198 {strides = array<i32>} : memref<2x32xf32, #tpu.memory_space<vmem>>, vector<1x32xf32>,
    return
  }
}

</mosaic_0001>

<llo_original>
// kernel: abmil_embedder.1
$region0: #{abmil_embedder.1}
  #allocation0 [shape = 'u32[]', space=smem, size = 0x4, offset = 0x4, fixed_abs, tag = 'smem constant byte address 0x4 - core index']
  #allocation1 [shape = 'u32[144,128]{1,0:T(1,128)}', space=vmem, size = 0x12000, scoped, tag = 'internal scratch']
  %s0 = inlined_call_operand.vmem [shape: f32[16,32], index: 0, kind: input, shape index: {}]
  %s1 = inlined_call_operand.vmem [shape: f32[32,96], index: 1, kind: input, shape index: {}]
  %s2 = inlined_call_operand.vmem [shape: f32[10,32], index: 2, kind: input, shape index: {}]
  %s3 = inlined_call_operand.hbm [shape: f32[2,32], index: 3, kind: output, shape index: {}]
  %s4 = sld [smem:[#allocation0]]
  $region22: #{abmil_embedder.1} parent=0
    _
  %s6 = ssub.s32 1, %s4
  %s7 = scalar_select 0, %s6, %s4
  $region1: #{abmil_embedder.1} parent=0
    #allocation2 [shape = 'u8[1024]{0}', space=vmem, size = 0x400, scoped, tag = 'output window, operand 0, single buffered']
    #allocation3 [shape = 's32[1]{0}', space=sflag, size = 0x4, scoped, tag = 'scoped memory for abmil_embedder.1']
    %8 = vsyncpa [#allocation3], 0
    // Predicated region
    $region2: #{abmil_embedder.1} parent=1 // pred_check
      _
    $region3: #{abmil_embedder.1} parent=1 // pred_check_branch
      %10 = sbr.rel (0) target = $region5
    $region4: #{abmil_embedder.1} parent=1 // pred_region
      _
    $region5: #{abmil_embedder.1} parent=1 // pred_fallthru
      _
    // Predicated region
    $region6: #{abmil_embedder.1} parent=1 // pred_check
      _
    $region7: #{abmil_embedder.1} parent=1 // pred_check_branch
      %12 = sbr.rel (0) target = $region9
    $region8: #{abmil_embedder.1} parent=1 // pred_region
      _
    $region9: #{abmil_embedder.1} parent=1 // pred_fallthru
      _
    // Predicated region
    $region10: #{abmil_embedder.1} parent=1 // pred_check
      _
    $region11: #{abmil_embedder.1} parent=1 // pred_check_branch
      %14 = sbr.rel (0) target = $region13
    $region12: #{abmil_embedder.1} parent=1 // pred_region
      _
    $region13: #{abmil_embedder.1} parent=1 // pred_fallthru
      _
    %v15 = vld [vmem:[%s0] sm:$0xff]
    %v16 = vld [vmem:[%s0 + $0x8] sm:$0xff]
    %v17 = vld [vmem:[%s1] sm:$0xff]
    %v18 = vld [vmem:[%s1 + $0x8] sm:$0xff]
    %v19 = vld [vmem:[%s1 + $0x10] sm:$0xff]
    %v20 = vld [vmem:[%s1 + $0x18] sm:$0xff]
    %v21 = vld [vmem:[%s2] sm:$0xff]
    %v22 = vld [vmem:[%s2 + $0x8] sm:$0x3]
    %v23 = vlaneseq
    %v24 = vshrl.u32 %v23, 7
    %v25 = vsub.s32 0, %v24
    %v26 = vrot.slane %v21, %v25
    %vm27 = vcmask 261120
    %v29 = vsel %vm27, %v15, 0
    %v32 = vsel %vm27, %v16, 0
    %34 = vmatprep.subr.mxu0 0.0
    %35 = vmatpush1.msra.mxu0 %v17
    %36 = vmatprep.subr.mxu0 0.0
    %37 = vmatpush1.msra.mxu0 %v18
    %38 = vmatprep.subr.mxu0 0.0
    %39 = vmatpush1.msra.mxu0 %v19
    %40 = vmatprep.subr.mxu0 0.0
    %41 = vmatpush1.msra.mxu0 %v20
    %42 = vmatprep.subr.mxu0 0.0
    %43 = vmatpush1.msra.mxu0 0.0
    %44 = vmatprep.subr.mxu0 0.0
    %45 = vmatpush1.msra.mxu0 0.0
    %46 = vmatprep.subr.mxu0 0.0
    %47 = vmatpush1.msra.mxu0 0.0
    %48 = vmatprep.subr.mxu0 0.0
    %49 = vmatpush1.msra.mxu0 0.0
    %50 = vmatprep.subr.mxu0 0.0
    %51 = vmatpush1.msra.mxu0 0.0
    %52 = vmatprep.subr.mxu0 0.0
    %53 = vmatpush1.msra.mxu0 0.0
    %54 = vmatprep.subr.mxu0 0.0
    %55 = vmatpush1.msra.mxu0 0.0
    %56 = vmatprep.subr.mxu0 0.0
    %57 = vmatpush1.msra.mxu0 0.0
    %58 = vmatprep.subr.mxu0 0.0
    %59 = vmatpush1.msra.mxu0 0.0
    %60 = vmatprep.subr.mxu0 0.0
    %61 = vmatpush1.msra.mxu0 0.0
    %62 = vmatprep.subr.mxu0 0.0
    %63 = vmatpush1.msra.mxu0 0.0
    %64 = vmatprep.subr.mxu0 0.0
    %65 = vmatpush1.msra.mxu0 0.0
    %66 = vmatprep.subr.mxu0 0.0
    %67 = vmatpush1.msra.mxu0 0.0
    %68 = vmatprep.subr.mxu0 0.0
    %69 = vmatpush1.msra.mxu0 0.0
    %70 = vmatprep.subr.mxu0 0.0
    %71 = vmatpush1.msra.mxu0 0.0
    %72 = vmatprep.subr.mxu0 0.0
    %73 = vmatpush1.msra.mxu0 0.0
    %74 = vmatprep.subr.mxu0 0.0
    %75 = vmatpush1.msra.mxu0 0.0
    %76 = vmatprep.subr.mxu0 0.0
    %77 = vmatpush1.msra.mxu0 0.0
    %78 = vmatprep.subr.mxu0 0.0
    %79 = vmatpush1.msra.mxu0 0.0
    %80 = vmatprep.subr.mxu0 0.0
    %81 = vmatpush1.msra.mxu0 0.0
    %82 = vmatprep.subr.mxu0 0.0
    %83 = vmatpush1.msra.mxu0 0.0
    %84 = vmatprep.subr.mxu0 0.0
    %85 = vmatpush1.msra.mxu0 0.0
    %86 = vmatprep.subr.mxu0 0.0
    %87 = vmatpush1.msra.mxu0 0.0
    %88 = vmatprep.subr.mxu0 0.0
    %89 = vmatpush1.msra.mxu0 0.0
    %90 = vmatprep.subr.mxu0 0.0
    %91 = vmatpush1.msra.mxu0 0.0
    %92 = vmatprep.subr.mxu0 0.0
    %93 = vmatpush1.msra.mxu0 0.0
    %94 = vmatprep.subr.mxu0 0.0
    %95 = vmatpush1.msra.mxu0 0.0
    %96 = vmatprep.subr.mxu0 0.0
    %97 = vmatpush1.msra.mxu0 0.0
    %98 = vmatprep.mubr.f32.mxu0 0.0
    %99 = vmatmul.mubr.f32.gmra.mrb[0].mxu0 %v29
    %v100 = vpop.f32.mrb[0].mxu0
    %v101 = vadd.f32 %v26, %v100
    %v102 = vpop.f32.mrb[0].mxu0
    %103 = vmatprep.mubr.f32.mxu0 0.0
    %104 = vmatmul.mubr.f32.gmra.mrb[0].mxu0 %v32
    %v105 = vpop.f32.mrb[0].mxu0
    %v106 = vadd.f32 %v26, %v105
    %v107 = vpop.f32.mrb[0].mxu0
    %108 = vdwg.mxu0
    %v109 = vsel %vm27, %v101, 0.0
    %110 = vadd.xlane.f32.xlu0 %v109
    %v111 = vpop.xlane.xlu0 %110
    %v112 = vsel %vm27, %v106, 0.0
    %113 = vadd.xlane.f32.xlu0 %v112
    %v114 = vpop.xlane.xlu0 %113
    %v115 = vrcp.pop 32.0
    %v116 = vmul.f32 %v111, %v115
    %v117 = vmul.f32 %v114, %v115
    %v118 = vsub.f32 %v101, %v116
    %v119 = vsub.f32 %v106, %v117
    %v120 = vmul.f32 %v118, %v118
    %v121 = vmul.f32 %v119, %v119
    %v122 = vsel %vm27, %v120, 0.0
    %123 = vadd.xlane.f32.xlu0 %v122
    %v124 = vpop.xlane.xlu0 %123
    %v125 = vsel %vm27, %v121, 0.0
    %126 = vadd.xlane.f32.xlu0 %v125
    %v127 = vpop.xlane.xlu0 %126
    %v128 = vmul.f32 %v124, %v115
    %v129 = vmul.f32 %v127, %v115
    %v130 = vadd.f32 %v128, 1e-05
    %v131 = vadd.f32 %v129, 1e-05
    %v132 = vrsqrt.pop %v130
    %v133 = vrsqrt.pop %v131
    %v134 = vmul.f32 %v118, %v132
    %v135 = vmul.f32 %v119, %v133
    %v136 = vlaneseq
    %v137 = vshrl.u32 %v136, 7
    %v138 = vsub.s32 1, %v137
    %v139 = vrot.slane %v21, %v138
    %v140 = vmul.f32 %v134, %v139
    %v141 = vmul.f32 %v135, %v139
    %v142 = vlaneseq
    %v143 = vshrl.u32 %v142, 7
    %v144 = vsub.s32 2, %v143
    %v145 = vrot.slane %v21, %v144
    %v146 = vadd.f32 %v140, %v145
    %v147 = vadd.f32 %v141, %v145
    %v148 = vmul.f32 %v146, 0.5
    %v149 = vmul.f32 %v147, 0.5
    %v150 = vmul.f32 %v146, 0.70710677
    %v151 = vmul.f32 %v147, 0.70710677
    %vm152 = vcmp.ge.f32.partialorder %v150, 0.0
    %vm153 = vcmp.ge.f32.partialorder %v151, 0.0
    %v154 = vsel %vm152, 1.0, -1.0
    %v155 = vsel %vm153, 1.0, -1.0
    %v156 = vand.u32 2147483647, %v150
    %v157 = vand.u32 2147483647, %v151
    %v158 = vmul.f32 %v156, 0.3275911
    %v159 = vmul.f32 %v157, 0.3275911
    %v160 = vadd.f32 %v158, 1.0
    %v161 = vadd.f32 %v159, 1.0
    %v162 = vrcp.pop %v160
    %v163 = vmul.f32 1.0, %v162
    %v164 = vrcp.pop %v161
    %v165 = vmul.f32 1.0, %v164
    %v166 = vmul.f32 %v163, 1.0614054
    %v167 = vmul.f32 %v165, 1.0614054
    %v168 = vadd.f32 %v166, -1.4531521
    %v169 = vadd.f32 %v167, -1.4531521
    %v170 = vmul.f32 %v163, %v168
    %v171 = vmul.f32 %v165, %v169
    %v172 = vadd.f32 %v170, 1.4214138
    %v173 = vadd.f32 %v171, 1.4214138
    %v174 = vmul.f32 %v163, %v172
    %v175 = vmul.f32 %v165, %v173
    %v176 = vadd.f32 %v174, -0.28449672
    %v177 = vadd.f32 %v175, -0.28449672
    %v178 = vmul.f32 %v163, %v176
    %v179 = vmul.f32 %v165, %v177
    %v180 = vadd.f32 %v178, 0.2548296
    %v181 = vadd.f32 %v179, 0.2548296
    %v182 = vmul.f32 %v163, %v180
    %v183 = vmul.f32 %v165, %v181
    %v184 = vsub.f32 0.0, %v156
    %v185 = vsub.f32 0.0, %v157
    %v186 = vmul.f32 %v184, %v156
    %v187 = vmul.f32 %v185, %v157
    %v188 = vmul.f32 %v186, 1.442695
    %v189 = vpow.pop %v188
    %v190 = vmul.f32 %v187, 1.442695
    %v191 = vpow.pop %v190
    %v192 = vmul.f32 %v182, %v189
    %v193 = vmul.f32 %v183, %v191
    %v194 = vsub.f32 1.0, %v192
    %v195 = vsub.f32 1.0, %v193
    %v196 = vmul.f32 %v154, %v194
    %v197 = vmul.f32 %v155, %v195
    %v198 = vadd.f32 %v196, 1.0
    %v199 = vadd.f32 %v197, 1.0
    %v200 = vmul.f32 %v148, %v198
    %v201 = vmul.f32 %v149, %v199
    %v202 = vlaneseq
    %v203 = vshrl.u32 %v202, 7
    %v204 = vsub.s32 3, %v203
    %v205 = vrot.slane %v21, %v204
    %210 = vrot.lane.b32.xlu0 %v17, 96
    %v211 = vpop.permute.xlu0 %210
    %212 = vrot.lane.b32.xlu0 %v18, 96
    %v213 = vpop.permute.xlu0 %212
    %214 = vrot.lane.b32.xlu0 %v19, 96
    %v215 = vpop.permute.xlu0 %214
    %216 = vrot.lane.b32.xlu0 %v20, 96
    %v217 = vpop.permute.xlu0 %216
    %v223 = vsel %vm27, %v200, 0
    %v226 = vsel %vm27, %v201, 0
    %228 = vmatprep.subr.mxu0 0.0
    %229 = vmatpush1.msra.mxu0 %v211
    %230 = vmatprep.subr.mxu0 0.0
    %231 = vmatpush1.msra.mxu0 %v213
    %232 = vmatprep.subr.mxu0 0.0
    %233 = vmatpush1.msra.mxu0 %v215
    %234 = vmatprep.subr.mxu0 0.0
    %235 = vmatpush1.msra.mxu0 %v217
    %236 = vmatprep.subr.mxu0 0.0
    %237 = vmatpush1.msra.mxu0 0.0
    %238 = vmatprep.subr.mxu0 0.0
    %239 = vmatpush1.msra.mxu0 0.0
    %240 = vmatprep.subr.mxu0 0.0
    %241 = vmatpush1.msra.mxu0 0.0
    %242 = vmatprep.subr.mxu0 0.0
    %243 = vmatpush1.msra.mxu0 0.0
    %244 = vmatprep.subr.mxu0 0.0
    %245 = vmatpush1.msra.mxu0 0.0
    %246 = vmatprep.subr.mxu0 0.0
    %247 = vmatpush1.msra.mxu0 0.0
    %248 = vmatprep.subr.mxu0 0.0
    %249 = vmatpush1.msra.mxu0 0.0
    %250 = vmatprep.subr.mxu0 0.0
    %251 = vmatpush1.msra.mxu0 0.0
    %252 = vmatprep.subr.mxu0 0.0
    %253 = vmatpush1.msra.mxu0 0.0
    %254 = vmatprep.subr.mxu0 0.0
    %255 = vmatpush1.msra.mxu0 0.0
    %256 = vmatprep.subr.mxu0 0.0
    %257 = vmatpush1.msra.mxu0 0.0
    %258 = vmatprep.subr.mxu0 0.0
    %259 = vmatpush1.msra.mxu0 0.0
    %260 = vmatprep.subr.mxu0 0.0
    %261 = vmatpush1.msra.mxu0 0.0
    %262 = vmatprep.subr.mxu0 0.0
    %263 = vmatpush1.msra.mxu0 0.0
    %264 = vmatprep.subr.mxu0 0.0
    %265 = vmatpush1.msra.mxu0 0.0
    %266 = vmatprep.subr.mxu0 0.0
    %267 = vmatpush1.msra.mxu0 0.0
    %268 = vmatprep.subr.mxu0 0.0
    %269 = vmatpush1.msra.mxu0 0.0
    %270 = vmatprep.subr.mxu0 0.0
    %271 = vmatpush1.msra.mxu0 0.0
    %272 = vmatprep.subr.mxu0 0.0
    %273 = vmatpush1.msra.mxu0 0.0
    %274 = vmatprep.subr.mxu0 0.0
    %275 = vmatpush1.msra.mxu0 0.0
    %276 = vmatprep.subr.mxu0 0.0
    %277 = vmatpush1.msra.mxu0 0.0
    %278 = vmatprep.subr.mxu0 0.0
    %279 = vmatpush1.msra.mxu0 0.0
    %280 = vmatprep.subr.mxu0 0.0
    %281 = vmatpush1.msra.mxu0 0.0
    %282 = vmatprep.subr.mxu0 0.0
    %283 = vmatpush1.msra.mxu0 0.0
    %284 = vmatprep.subr.mxu0 0.0
    %285 = vmatpush1.msra.mxu0 0.0
    %286 = vmatprep.subr.mxu0 0.0
    %287 = vmatpush1.msra.mxu0 0.0
    %288 = vmatprep.subr.mxu0 0.0
    %289 = vmatpush1.msra.mxu0 0.0
    %290 = vmatprep.subr.mxu0 0.0
    %291 = vmatpush1.msra.mxu0 0.0
    %292 = vmatprep.mubr.f32.mxu0 0.0
    %293 = vmatmul.mubr.f32.gmra.mrb[0].mxu0 %v223
    %v294 = vpop.f32.mrb[0].mxu0
    %v295 = vadd.f32 %v205, %v294
    %v296 = vpop.f32.mrb[0].mxu0
    %297 = vmatprep.mubr.f32.mxu0 0.0
    %298 = vmatmul.mubr.f32.gmra.mrb[0].mxu0 %v226
    %v299 = vpop.f32.mrb[0].mxu0
    %v300 = vadd.f32 %v205, %v299
    %v301 = vpop.f32.mrb[0].mxu0
    %302 = vdwg.mxu0
    %v303 = vsel %vm27, %v295, 0.0
    %304 = vadd.xlane.f32.xlu0 %v303
    %v305 = vpop.xlane.xlu0 %304
    %v306 = vsel %vm27, %v300, 0.0
    %307 = vadd.xlane.f32.xlu0 %v306
    %v308 = vpop.xlane.xlu0 %307
    %v309 = vmul.f32 %v305, %v115
    %v310 = vmul.f32 %v308, %v115
    %v311 = vsub.f32 %v295, %v309
    %v312 = vsub.f32 %v300, %v310
    %v313 = vmul.f32 %v311, %v311
    %v314 = vmul.f32 %v312, %v312
    %v315 = vsel %vm27, %v313, 0.0
    %316 = vadd.xlane.f32.xlu0 %v315
    %v317 = vpop.xlane.xlu0 %316
    %v318 = vsel %vm27, %v314, 0.0
    %319 = vadd.xlane.f32.xlu0 %v318
    %v320 = vpop.xlane.xlu0 %319
    %v321 = vmul.f32 %v317, %v115
    %v322 = vmul.f32 %v320, %v115
    %v323 = vadd.f32 %v321, 1e-05
    %v324 = vadd.f32 %v322, 1e-05
    %v325 = vrsqrt.pop %v323
    %v326 = vrsqrt.pop %v324
    %v327 = vmul.f32 %v311, %v325
    %v328 = vmul.f32 %v312, %v326
    %v329 = vlaneseq
    %v330 = vshrl.u32 %v329, 7
    %v331 = vsub.s32 4, %v330
    %v332 = vrot.slane %v21, %v331
    %v333 = vmul.f32 %v327, %v332
    %v334 = vmul.f32 %v328, %v332
    %v335 = vlaneseq
    %v336 = vshrl.u32 %v335, 7
    %v337 = vsub.s32 5, %v336
    %v338 = vrot.slane %v21, %v337
    %v339 = vadd.f32 %v333, %v338
    %v340 = vadd.f32 %v334, %v338
    %v341 = vmul.f32 %v339, 0.5
    %v342 = vmul.f32 %v340, 0.5
    %v343 = vmul.f32 %v339, 0.70710677
    %v344 = vmul.f32 %v340, 0.70710677
    %vm345 = vcmp.ge.f32.partialorder %v343, 0.0
    %vm346 = vcmp.ge.f32.partialorder %v344, 0.0
    %v347 = vsel %vm345, 1.0, -1.0
    %v348 = vsel %vm346, 1.0, -1.0
    %v349 = vand.u32 2147483647, %v343
    %v350 = vand.u32 2147483647, %v344
    %v351 = vmul.f32 %v349, 0.3275911
    %v352 = vmul.f32 %v350, 0.3275911
    %v353 = vadd.f32 %v351, 1.0
    %v354 = vadd.f32 %v352, 1.0
    %v355 = vrcp.pop %v353
    %v356 = vmul.f32 1.0, %v355
    %v357 = vrcp.pop %v354
    %v358 = vmul.f32 1.0, %v357
    %v359 = vmul.f32 %v356, 1.0614054
    %v360 = vmul.f32 %v358, 1.0614054
    %v361 = vadd.f32 %v359, -1.4531521
    %v362 = vadd.f32 %v360, -1.4531521
    %v363 = vmul.f32 %v356, %v361
    %v364 = vmul.f32 %v358, %v362
    %v365 = vadd.f32 %v363, 1.4214138
    %v366 = vadd.f32 %v364, 1.4214138
    %v367 = vmul.f32 %v356, %v365
    %v368 = vmul.f32 %v358, %v366
    %v369 = vadd.f32 %v367, -0.28449672
    %v370 = vadd.f32 %v368, -0.28449672
    %v371 = vmul.f32 %v356, %v369
    %v372 = vmul.f32 %v358, %v370
    %v373 = vadd.f32 %v371, 0.2548296
    %v374 = vadd.f32 %v372, 0.2548296
    %v375 = vmul.f32 %v356, %v373
    %v376 = vmul.f32 %v358, %v374
    %v377 = vsub.f32 0.0, %v349
    %v378 = vsub.f32 0.0, %v350
    %v379 = vmul.f32 %v377, %v349
    %v380 = vmul.f32 %v378, %v350
    %v381 = vmul.f32 %v379, 1.442695
    %v382 = vpow.pop %v381
    %v383 = vmul.f32 %v380, 1.442695
    %v384 = vpow.pop %v383
    %v385 = vmul.f32 %v375, %v382
    %v386 = vmul.f32 %v376, %v384
    %v387 = vsub.f32 1.0, %v385
    %v388 = vsub.f32 1.0, %v386
    %v389 = vmul.f32 %v347, %v387
    %v390 = vmul.f32 %v348, %v388
    %v391 = vadd.f32 %v389, 1.0
    %v392 = vadd.f32 %v390, 1.0
    %v393 = vmul.f32 %v341, %v391
    %v394 = vmul.f32 %v342, %v392
    %395 = vrot.lane.b32.xlu0 %v17, 64
    %v396 = vpop.permute.xlu0 %395
    %397 = vrot.lane.b32.xlu0 %v18, 64
    %v398 = vpop.permute.xlu0 %397
    %399 = vrot.lane.b32.xlu0 %v19, 64
    %v400 = vpop.permute.xlu0 %399
    %401 = vrot.lane.b32.xlu0 %v20, 64
    %v402 = vpop.permute.xlu0 %401
    %v408 = vsel %vm27, %v393, 0
    %v411 = vsel %vm27, %v394, 0
    %413 = vmatprep.subr.mxu0 0.0
    %414 = vmatpush1.msra.mxu0 %v396
    %415 = vmatprep.subr.mxu0 0.0
    %416 = vmatpush1.msra.mxu0 %v398
    %417 = vmatprep.subr.mxu0 0.0
    %418 = vmatpush1.msra.mxu0 %v400
    %419 = vmatprep.subr.mxu0 0.0
    %420 = vmatpush1.msra.mxu0 %v402
    %421 = vmatprep.subr.mxu0 0.0
    %422 = vmatpush1.msra.mxu0 0.0
    %423 = vmatprep.subr.mxu0 0.0
    %424 = vmatpush1.msra.mxu0 0.0
    %425 = vmatprep.subr.mxu0 0.0
    %426 = vmatpush1.msra.mxu0 0.0
    %427 = vmatprep.subr.mxu0 0.0
    %428 = vmatpush1.msra.mxu0 0.0
    %429 = vmatprep.subr.mxu0 0.0
    %430 = vmatpush1.msra.mxu0 0.0
    %431 = vmatprep.subr.mxu0 0.0
    %432 = vmatpush1.msra.mxu0 0.0
    %433 = vmatprep.subr.mxu0 0.0
    %434 = vmatpush1.msra.mxu0 0.0
    %435 = vmatprep.subr.mxu0 0.0
    %436 = vmatpush1.msra.mxu0 0.0
    %437 = vmatprep.subr.mxu0 0.0
    %438 = vmatpush1.msra.mxu0 0.0
    %439 = vmatprep.subr.mxu0 0.0
    %440 = vmatpush1.msra.mxu0 0.0
    %441 = vmatprep.subr.mxu0 0.0
    %442 = vmatpush1.msra.mxu0 0.0
    %443 = vmatprep.subr.mxu0 0.0
    %444 = vmatpush1.msra.mxu0 0.0
    %445 = vmatprep.subr.mxu0 0.0
    %446 = vmatpush1.msra.mxu0 0.0
    %447 = vmatprep.subr.mxu0 0.0
    %448 = vmatpush1.msra.mxu0 0.0
    %449 = vmatprep.subr.mxu0 0.0
    %450 = vmatpush1.msra.mxu0 0.0
    %451 = vmatprep.subr.mxu0 0.0
    %452 = vmatpush1.msra.mxu0 0.0
    %453 = vmatprep.subr.mxu0 0.0
    %454 = vmatpush1.msra.mxu0 0.0
    %455 = vmatprep.subr.mxu0 0.0
    %456 = vmatpush1.msra.mxu0 0.0
    %457 = vmatprep.subr.mxu0 0.0
    %458 = vmatpush1.msra.mxu0 0.0
    %459 = vmatprep.subr.mxu0 0.0
    %460 = vmatpush1.msra.mxu0 0.0
    %461 = vmatprep.subr.mxu0 0.0
    %462 = vmatpush1.msra.mxu0 0.0
    %463 = vmatprep.subr.mxu0 0.0
    %464 = vmatpush1.msra.mxu0 0.0
    %465 = vmatprep.subr.mxu0 0.0
    %466 = vmatpush1.msra.mxu0 0.0
    %467 = vmatprep.subr.mxu0 0.0
    %468 = vmatpush1.msra.mxu0 0.0
    %469 = vmatprep.subr.mxu0 0.0
    %470 = vmatpush1.msra.mxu0 0.0
    %471 = vmatprep.subr.mxu0 0.0
    %472 = vmatpush1.msra.mxu0 0.0
    %473 = vmatprep.subr.mxu0 0.0
    %474 = vmatpush1.msra.mxu0 0.0
    %475 = vmatprep.subr.mxu0 0.0
    %476 = vmatpush1.msra.mxu0 0.0
    %477 = vmatprep.mubr.f32.mxu0 0.0
    %478 = vmatmul.mubr.f32.gmra.mrb[0].mxu0 %v408
    %v479 = vpop.f32.mrb[0].mxu0
    %v480 = vadd.f32 0.0, %v479
    %v481 = vpop.f32.mrb[0].mxu0
    %482 = vmatprep.mubr.f32.mxu0 0.0
    %483 = vmatmul.mubr.f32.gmra.mrb[0].mxu0 %v411
    %v484 = vpop.f32.mrb[0].mxu0
    %v485 = vadd.f32 0.0, %v484
    %v486 = vpop.f32.mrb[0].mxu0
    %487 = vdwg.mxu0
    %v488 = vlaneseq
    %v489 = vshrl.u32 %v488, 7
    %v490 = vsub.s32 6, %v489
    %v491 = vrot.slane %v21, %v490
    %v492 = vadd.f32 %v480, %v491
    %v493 = vadd.f32 %v485, %v491
    %v494 = vtanh.pop %v492
    %v495 = vtanh.pop %v493
    %v496 = vlaneseq
    %v497 = vshrl.u32 %v496, 7
    %v498 = vsub.s32 7, %v497
    %v499 = vrot.slane %v21, %v498
    %501 = vrot.lane.b32.xlu0 %v499, 16
    %v502 = vpop.permute.xlu0 %501
    %v504 = vadd.f32 %v480, %v502
    %v505 = vadd.f32 %v485, %v502
    %v506 = vxor.u32 %v504, 2147483648
    %v507 = vxor.u32 %v505, 2147483648
    %v508 = vmul.f32 %v506, 1.442695
    %v509 = vpow.pop %v508
    %v510 = vmul.f32 %v507, 1.442695
    %v511 = vpow.pop %v510
    %v512 = vadd.f32 %v509, 1.0
    %v513 = vadd.f32 %v511, 1.0
    %v514 = vrcp.pop %v512
    %v515 = vmul.f32 1.0, %v514
    %v516 = vrcp.pop %v513
    %v517 = vmul.f32 1.0, %v516
    %520 = vrot.lane.b32.xlu0 %v515, 112
    %v521 = vpop.permute.xlu0 %520
    %522 = vrot.lane.b32.xlu0 %v517, 112
    %v523 = vpop.permute.xlu0 %522
    %v526 = vmul.f32 %v494, %v521
    %v527 = vmul.f32 %v495, %v523
    %v528 = vlaneseq
    %v529 = vshrl.u32 %v528, 7
    %v530 = vsub.s32 0, %v529
    %v531 = vrot.slane %v22, %v530
    %v532 = vmul.f32 %v526, %v531
    %v533 = vmul.f32 %v527, %v531
    %vm534 = vcmask 130048
    %v535 = vsel %vm534, %v532, 0.0
    %536 = vadd.xlane.f32.xlu0 %v535
    %v537 = vpop.xlane.xlu0 %536
    %v538 = vsel %vm534, %v533, 0.0
    %539 = vadd.xlane.f32.xlu0 %v538
    %v540 = vpop.xlane.xlu0 %539
    %v541 = vlaneseq
    %v542 = vshrl.u32 %v541, 7
    %v543 = vsub.s32 1, %v542
    %v544 = vrot.slane %v22, %v543
    %v545 = vadd.f32 %v537, %v544
    %v546 = vadd.f32 %v540, %v544
    %vm547 = vcmask 7168
    %v548 = vsel %vm547, %v545, -inf
    %v549 = vrot.slane %v548, 4
    %v550 = vmax.f32 %v548, %v549
    %v551 = vrot.slane %v550, 2
    %v552 = vmax.f32 %v550, %v551
    %v553 = vrot.slane %v552, 1
    %v554 = vmax.f32 %v552, %v553
    %v555 = vsub.f32 %v545, %v554
    %v556 = vmul.f32 %v555, 1.442695
    %v557 = vpow.pop %v556
    %v558 = vsel %vm547, %v557, 0.0
    %v559 = vrot.slane %v558, 4
    %v560 = vadd.f32 %v558, %v559
    %v561 = vrot.slane %v560, 2
    %v562 = vadd.f32 %v560, %v561
    %v563 = vrot.slane %v562, 1
    %v564 = vadd.f32 %v562, %v563
    %v565 = vrcp.pop %v564
    %v566 = vmul.f32 %v557, %v565
    %568 = vset.pattern.permute.xlu0 0
    %569 = vperm.xlu0 %568, %v566
    %v570 = vpop.permute.xlu0 %569
    %v572 = vmul.f32 %v393, %v570
    %v573 = vsel %vm27, %v572, 0.0
    %v574 = vrot.slane %v573, 4
    %v575 = vadd.f32 %v573, %v574
    %v576 = vrot.slane %v575, 2
    %v577 = vadd.f32 %v575, %v576
    %v578 = vrot.slane %v577, 1
    %v579 = vadd.f32 %v577, %v578
    %vm580 = vcmask 253952
    %581 = vst.msk [vmem:[#allocation2] sm:$0x1] %vm580, %v579
    %v582 = vsel %vm547, %v546, -inf
    %v583 = vrot.slane %v582, 4
    %v584 = vmax.f32 %v582, %v583
    %v585 = vrot.slane %v584, 2
    %v586 = vmax.f32 %v584, %v585
    %v587 = vrot.slane %v586, 1
    %v588 = vmax.f32 %v586, %v587
    %v589 = vsub.f32 %v546, %v588
    %v590 = vmul.f32 %v589, 1.442695
    %v591 = vpow.pop %v590
    %v592 = vsel %vm547, %v591, 0.0
    %v593 = vrot.slane %v592, 4
    %v594 = vadd.f32 %v592, %v593
    %v595 = vrot.slane %v594, 2
    %v596 = vadd.f32 %v594, %v595
    %v597 = vrot.slane %v596, 1
    %v598 = vadd.f32 %v596, %v597
    %v599 = vrcp.pop %v598
    %v600 = vmul.f32 %v591, %v599
    %602 = vset.pattern.permute.xlu0 0
    %603 = vperm.xlu0 %602, %v600
    %v604 = vpop.permute.xlu0 %603
    %v606 = vmul.f32 %v394, %v604
    %v607 = vsel %vm27, %v606, 0.0
    %v608 = vrot.slane %v607, 4
    %v609 = vadd.f32 %v607, %v608
    %v610 = vrot.slane %v609, 2
    %v611 = vadd.f32 %v609, %v610
    %v612 = vrot.slane %v611, 1
    %v613 = vadd.f32 %v611, %v612
    %614 = vst.msk [vmem:[#allocation2 + $0x1] sm:$0x1] %vm580, %v613
    // Predicated region
    $region14: #{abmil_embedder.1} parent=1 // pred_check
      _
    $region15: #{abmil_embedder.1} parent=1 // pred_check_branch
      %616 = sbr.rel (0) target = $region17
    $region16: #{abmil_embedder.1} parent=1 // pred_region
      %s618 = ssub.s32 32, 32
      %619 = vsyncadd [#allocation3], %s618
      %s621 = sshll.u32 [#allocation2], 4
      %s622 = int_to_ptr.vmem [resolvable:$true] %s621
      %624 = dma.vmem_to_hbm [thread:$0]  %s622, 32, %s3, [#allocation3]
    $region17: #{abmil_embedder.1} parent=1 // pred_fallthru
      _
    // Predicated region
    $region18: #{abmil_embedder.1} parent=1 // pred_check
      _
    $region19: #{abmil_embedder.1} parent=1 // pred_check_branch
      %626 = sbr.rel (0) target = $region21
    $region20: #{abmil_embedder.1} parent=1 // pred_region
      %627 = dma.done [#allocation3], 32
    $region21: #{abmil_embedder.1} parent=1 // pred_fallthru
      _
    %628 = vsyncpa [#allocation3], 1

</llo_original>
